<compile_context>
chip_gen: v7x
topology: tpu7x:2x2x1
jax: 0.10.0
libtpu: 0.0.40
codegen_flags: <defaults>
</compile_context>

<pallas_src>
import jax
import jax.numpy as jnp
from jax.experimental import pallas as pl
from jax.experimental.pallas import tpu as pltpu

_NEG_BIG = -1e30  # bias value for padded vocab columns (kept finite -> no NaNs)


def _round_up(n: int, m: int) -> int:
    return ((n + m - 1) // m) * m


def _cdiv(a: int, b: int) -> int:
    return (a + b - 1) // b


# ---------------------------------------------------------------------------
# Kernels
# ---------------------------------------------------------------------------

def _generator_kernel_single(x_ref, w_ref, b_ref, o_ref):
    """Whole-vocab-in-VMEM path (small / moderate vocab).

    x_ref: (tm, D) bf16   w_ref: (V, D) bf16   b_ref: (1, V) f32   o_ref: (tm, V)
    """
    logits = jax.lax.dot_general(
        x_ref[...], w_ref[...],
        dimension_numbers=(((1,), (1,)), ((), ())),   # contract d_model of both
        preferred_element_type=jnp.float32,
    ) + b_ref[...]
    m = jnp.max(logits, axis=-1, keepdims=True)
    shifted = logits - m
    lse = jnp.log(jnp.sum(jnp.exp(shifted), axis=-1, keepdims=True))
    o_ref[...] = (shifted - lse).astype(o_ref.dtype)


def _make_generator_kernel_tiled(nk: int, tv: int):
    """Vocab-tiled path: grid (row_tiles, nk), online logsumexp, in-place finalize."""

    def kernel(x_ref, w_ref, b_ref, o_ref, m_ref, l_ref):
        # x_ref: (tm, D) bf16   w_ref: (tv, D) bf16   b_ref: (1, tv) f32
        # o_ref: (tm, nk*tv) resident across the vocab axis
        # m_ref / l_ref: (tm, 1) f32 scratch (running max / running sum-exp)
        k = pl.program_id(1)

        @pl.when(k == 0)
        def _init():
            m_ref[...] = jnp.full(m_ref.shape, -jnp.inf, m_ref.dtype)
            l_ref[...] = jnp.zeros(l_ref.shape, l_ref.dtype)

        logits = jax.lax.dot_general(
            x_ref[...], w_ref[...],
            dimension_numbers=(((1,), (1,)), ((), ())),
            preferred_element_type=jnp.float32,
        ) + b_ref[...]

        # Stash the raw logits for this vocab tile directly into the resident
        # output block (lane-aligned dynamic offset -> unmasked stores).
        off = pl.multiple_of(k * tv, 128)
        o_ref[:, pl.ds(off, tv)] = logits.astype(o_ref.dtype)

        # Online (flash) logsumexp update, all in f32.
        m_prev = m_ref[...]
        m_new = jnp.maximum(m_prev, jnp.max(logits, axis=-1, keepdims=True))
        l_ref[...] = l_ref[...] * jnp.exp(m_prev - m_new) + jnp.sum(
            jnp.exp(logits - m_new), axis=-1, keepdims=True)
        m_ref[...] = m_new

        @pl.when(k == nk - 1)
        def _finalize():
            lse = m_ref[...] + jnp.log(l_ref[...])
            o_ref[...] = (o_ref[...].astype(jnp.float32) - lse).astype(o_ref.dtype)

    return kernel


# ---------------------------------------------------------------------------
# Wrapper
# ---------------------------------------------------------------------------

def generator_forward(x, weight, bias, *, tm=None, tv=None,
                      out_dtype=jnp.float32, vmem_limit_bytes=None):
    """log_softmax(x @ weight.T + bias, axis=-1) as a Pallas TPU kernel.

    x: (..., d_model); weight: (vocab, d_model); bias: (vocab,).
    Returns `out_dtype` log-probabilities of shape (..., vocab) (f32 default,
    matching the PyTorch module; pass bf16 for inference to halve HBM writes).
    """
    *lead, d_model = x.shape
    vocab, d_model_w = weight.shape
    assert d_model == d_model_w, "d_model mismatch between x and weight"
    M = 1
    for s in lead:
        M *= s
    M = max(M, 1)

    V_pad = _round_up(vocab, 128)
    out_bytes = jnp.dtype(out_dtype).itemsize

    # --- physical VMEM (conservative default = v7x's 64 MiB) ----------------
    vmem_cap = 64 << 20
    try:
        vmem_cap = int(pltpu.get_tpu_info().vmem_capacity_bytes)
    except Exception:
        pass
    budget = max(vmem_cap - (12 << 20), 24 << 20)

    # --- vocab tiling --------------------------------------------------------
    w_whole_bytes = V_pad * d_model * 2 + V_pad * 4   # bf16 W + f32 bias, 1 buffer
    if tv is None:
        if w_whole_bytes <= budget // 3:
            tv = V_pad                                 # whole vocab resident
        else:
            tv = next(c for c in (2048, 1024, 512, 256, 128) if V_pad % c == 0)
    assert V_pad % tv == 0, "tv must divide the padded vocab"
    assert tv == V_pad or tv % 128 == 0, "tv must be lane-aligned"
    nk = V_pad // tv

    # --- row tiling -----------------------------------------------------------
    if tm is None:
        # Per-row VMEM: resident output (x2 buffers) + x tile (x2 buffers).
        per_row = 2 * (V_pad * out_bytes + d_model * 2)
        fixed = w_whole_bytes if nk == 1 else 2 * (tv * d_model * 2 + tv * 4)
        tm_budget = max((budget - fixed) // max(per_row, 1), 8)
        # 256 is the safe cross-generation cap (v7x 128-256, v5e 256);
        # on v6e with the scratch removed, passing tm=512 halves W streaming.
        tm_max = max(min(256, tm_budget), 8)
        n_row = _cdiv(M, tm_max)
        if n_row == 1 and M > 128:
            n_row = 2                                  # keep both v7x TCs busy
        tm = _round_up(_cdiv(M, n_row), 8)
    tm = max(_round_up(tm, 8), 8)
    n_row = _cdiv(M, tm)
    M_pad = n_row * tm

    # --- explicit scoped-VMEM limit from the actual footprint ----------------
    if vmem_limit_bytes is None:
        x_b = 2 * tm * d_model * 2
        o_b = 2 * tm * V_pad * out_bytes
        if nk == 1:
            wb_b = w_whole_bytes                       # single-buffered constants
        else:
            wb_b = 2 * (tv * d_model * 2 + tv * 4)
        scratch_b = 2 * (tm * 4)
        total = x_b + o_b + wb_b + scratch_b
        vmem_limit_bytes = min(max(int(total * 1.25) + (8 << 20), 32 << 20),
                               vmem_cap - (2 << 20))

    # --- operand prep ---------------------------------------------------------
    x2d = x.reshape(M, d_model)
    if x2d.dtype != jnp.bfloat16:
        x2d = x2d.astype(jnp.bfloat16)
    if M_pad != M:
        x2d = jnp.pad(x2d, ((0, M_pad - M), (0, 0)))

    # TODO(synk): hold the LM-head weight in bf16 (and 128-aligned vocab)
    # upstream so this cast / pad never materializes extra HBM traffic per call.
    w = weight if weight.dtype == jnp.bfloat16 else weight.astype(jnp.bfloat16)
    b = bias.astype(jnp.float32)
    if V_pad != vocab:
        w = jnp.pad(w, ((0, V_pad - vocab), (0, 0)))
        b = jnp.pad(b, ((0, V_pad - vocab),), constant_values=_NEG_BIG)
    b2d = b.reshape(1, V_pad)

    # --- launch ---------------------------------------------------------------
    if nk == 1:
        def run_single(single_buffer_consts: bool):
            const_kw = {"pipeline_mode": pl.Buffered(1)} if single_buffer_consts else {}
            grid_spec = pltpu.PrefetchScalarGridSpec(
                num_scalar_prefetch=0,
                grid=(n_row,),
                in_specs=[
                    pl.BlockSpec((tm, d_model), lambda i: (i, 0)),            # x row tile
                    pl.BlockSpec((V_pad, d_model), lambda i: (0, 0), **const_kw),  # full W
                    pl.BlockSpec((1, V_pad), lambda i: (0, 0), **const_kw),   # bias
                ],
                out_specs=pl.BlockSpec((tm, V_pad), lambda i: (i, 0)),
            )
            return pl.pallas_call(
                _generator_kernel_single,
                out_shape=jax.ShapeDtypeStruct((M_pad, V_pad), out_dtype),
                grid_spec=grid_spec,
                compiler_params=pltpu.CompilerParams(
                    dimension_semantics=("parallel",),
                    vmem_limit_bytes=vmem_limit_bytes),
            )(x2d, w, b2d)

        try:
            out2d = run_single(True)          # single-buffer the constant W / bias
        except Exception:
            out2d = run_single(False)         # fallback: default double buffering
    else:
        grid_spec = pltpu.PrefetchScalarGridSpec(
            num_scalar_prefetch=0,
            grid=(n_row, nk),
            in_specs=[
                pl.BlockSpec((tm, d_model), lambda i, k: (i, 0)),   # x row tile
                pl.BlockSpec((tv, d_model), lambda i, k: (k, 0)),   # W vocab tile
                pl.BlockSpec((1, tv), lambda i, k: (0, k)),         # bias tile
            ],
            out_specs=pl.BlockSpec((tm, V_pad), lambda i, k: (i, 0)),
            scratch_shapes=[
                pltpu.VMEM((tm, 1), jnp.float32),   # running max
                pltpu.VMEM((tm, 1), jnp.float32),   # running sum-exp
            ],
        )
        out2d = pl.pallas_call(
            _make_generator_kernel_tiled(nk, tv),
            out_shape=jax.ShapeDtypeStruct((M_pad, V_pad), out_dtype),
            grid_spec=grid_spec,
            compiler_params=pltpu.CompilerParams(
                dimension_semantics=("parallel", "arbitrary"),
                vmem_limit_bytes=vmem_limit_bytes),
        )(x2d, w, b2d)

    out2d = out2d[:M, :vocab]
    return out2d.reshape(*lead, vocab)


# ---------------------------------------------------------------------------
# Self-test
# ---------------------------------------------------------------------------

if __name__ == "__main__":
    def ref_logprobs(x, w, b):
        # Same math as the kernel: bf16 operands into the MXU, f32 accumulation.
        logits = jax.lax.dot_general(
            x.astype(jnp.bfloat16), w.astype(jnp.bfloat16),
            dimension_numbers=(((x.ndim - 1,), (1,)), ((), ())),
            preferred_element_type=jnp.float32,
        ) + b
        return jax.nn.log_softmax(logits, axis=-1)

    # --- case 1: Generator(d_model=32, vocab=128) — whole-vocab path ---------
    batch, seq, d_model, vocab = 2, 8, 32, 128
    key = jax.random.PRNGKey(0)
    kx, kw, kb = jax.random.split(key, 3)
    bound = 1.0 / (d_model ** 0.5)
    weight = jax.random.uniform(kw, (vocab, d_model), jnp.float32, -bound, bound)
    bias = jax.random.uniform(kb, (vocab,), jnp.float32, -bound, bound)
    x = jax.random.normal(kx, (batch, seq, d_model), jnp.float32)

    y = jax.block_until_ready(generator_forward(x, weight, bias))
    assert y.shape == (batch, seq, vocab)
    assert jnp.all(jnp.isfinite(y))
    assert jnp.allclose(y, ref_logprobs(x, weight, bias), atol=1e-3, rtol=1e-3), \
        "mismatch vs bf16-matmul reference (whole-vocab path)"
    # semantic sanity vs full-f32 math (bf16 matmul adds only small error here)
    ref32 = jax.nn.log_softmax(x @ weight.T + bias, axis=-1)
    assert jnp.allclose(y, ref32, atol=5e-2), "mismatch vs f32 reference"

    # --- case 2: vocab-tiled online-logsumexp path (nk > 1) -------------------
    d2, v2 = 64, 384
    k2 = jax.random.PRNGKey(1)
    kx2, kw2, kb2 = jax.random.split(k2, 3)
    bound2 = 1.0 / (d2 ** 0.5)
    w2 = jax.random.uniform(kw2, (v2, d2), jnp.float32, -bound2, bound2)
    b2 = jax.random.uniform(kb2, (v2,), jnp.float32, -bound2, bound2)
    x2 = jax.random.normal(kx2, (batch, seq, d2), jnp.float32)

    y2 = jax.block_until_ready(generator_forward(x2, w2, b2, tv=128))   # nk = 3
    assert y2.shape == (batch, seq, v2)
    assert jnp.all(jnp.isfinite(y2))
    assert jnp.allclose(y2, ref_logprobs(x2, w2, b2), atol=1e-3, rtol=1e-3), \
        "mismatch vs bf16-matmul reference (tiled path)"

    # --- case 3: non-128-multiple vocab (padded columns + bias=-1e30) ---------
    d3, v3 = 32, 200
    k3 = jax.random.PRNGKey(2)
    kx3, kw3, kb3 = jax.random.split(k3, 3)
    bound3 = 1.0 / (d3 ** 0.5)
    w3 = jax.random.uniform(kw3, (v3, d3), jnp.float32, -bound3, bound3)
    b3 = jax.random.uniform(kb3, (v3,), jnp.float32, -bound3, bound3)
    x3 = jax.random.normal(kx3, (batch, seq, d3), jnp.float32)

    y3 = jax.block_until_ready(generator_forward(x3, w3, b3))
    assert y3.shape == (batch, seq, v3)
    assert jnp.all(jnp.isfinite(y3))
    assert jnp.allclose(y3, ref_logprobs(x3, w3, b3), atol=1e-3, rtol=1e-3), \
        "mismatch vs bf16-matmul reference (padded-vocab path)"

    print("KERNEL_OK")
</pallas_src>

<mosaic_0001>
module attributes {stable_mosaic.version = 11 : i64} {
  func.func @_generator_kernel_single(%arg0: i32, %arg1: memref<16x32xbf16, #tpu.memory_space<vmem>>, %arg2: memref<128x32xbf16, #tpu.memory_space<vmem>>, %arg3: memref<1x128xf32, #tpu.memory_space<vmem>>, %arg4: memref<16x128xf32, #tpu.memory_space<vmem>>) attributes {dimension_semantics = [#tpu.dimension_semantics<parallel>], iteration_bounds = array<i64: 1>, scalar_prefetch = 0 : i64, scratch_operands = 0 : i64, tpu.core_type = #tpu.core_type<tc>, window_params = [{transform_indices = @transform_0, window_bounds = array<i64: 16, 32>}, {pipeline_mode = #tpu.pipeline_mode<synchronous>, transform_indices = @transform_1, window_bounds = array<i64: 128, 32>}, {pipeline_mode = #tpu.pipeline_mode<synchronous>, transform_indices = @transform_2, window_bounds = array<i64: 1, 128>}, {transform_indices = @transform_3, window_bounds = array<i64: 16, 128>}]} {
    %c0 = arith.constant 0 : index
    %c0_0 = arith.constant 0 : index
    %0 = vector.load %arg1[%c0, %c0_0] : memref<16x32xbf16, #tpu.memory_space<vmem>>, vector<16x32xbf16>
    %c0_1 = arith.constant 0 : index
    %c0_2 = arith.constant 0 : index
    %1 = vector.load %arg2[%c0_1, %c0_2] : memref<128x32xbf16, #tpu.memory_space<vmem>>, vector<128x32xbf16>
    %cst = arith.constant dense<0.000000e+00> : vector<16x128xf32>
    %2 = tpu.matmul %0, %1, %cst {dimension_numbers = #tpu.dot_dimension_numbers<[1], [1], [0], [0], [0, 0, 1, 0], [], []>} : vector<16x32xbf16>, vector<128x32xbf16>, vector<16x128xf32> -> vector<16x128xf32>
    %c0_3 = arith.constant 0 : index
    %c0_4 = arith.constant 0 : index
    %3 = vector.load %arg3[%c0_3, %c0_4] : memref<1x128xf32, #tpu.memory_space<vmem>>, vector<1x128xf32>
    %4 = vector.broadcast %3 : vector<1x128xf32> to vector<16x128xf32>
    %5 = arith.addf %2, %4 : vector<16x128xf32>
    %cst_5 = arith.constant dense<0xFF800000> : vector<16xf32>
    %6 = vector.multi_reduction <maximumf>, %5, %cst_5 [1] : vector<16x128xf32> to vector<16xf32>
    %7 = vector.shape_cast %6 : vector<16xf32> to vector<16x1xf32>
    %8 = vector.broadcast %7 : vector<16x1xf32> to vector<16x128xf32>
    %9 = arith.subf %5, %8 : vector<16x128xf32>
    %10 = math.exp %9 : vector<16x128xf32>
    %cst_6 = arith.constant dense<0.000000e+00> : vector<16xf32>
    %11 = vector.multi_reduction <add>, %10, %cst_6 [1] : vector<16x128xf32> to vector<16xf32>
    %12 = vector.shape_cast %11 : vector<16xf32> to vector<16x1xf32>
    %13 = math.log %12 : vector<16x1xf32>
    %14 = vector.broadcast %13 : vector<16x1xf32> to vector<16x128xf32>
    %15 = arith.subf %9, %14 : vector<16x128xf32>
    %c0_7 = arith.constant 0 : index
    %c0_8 = arith.constant 0 : index
    %16 = vector.load %arg4[%c0_7, %c0_8] : memref<16x128xf32, #tpu.memory_space<vmem>>, vector<16x128xf32>
    tpu.vector_store %arg4[%c0_7, %c0_8], %15 {strides = array<i32>} : memref<16x128xf32, #tpu.memory_space<vmem>>, vector<16x128xf32>,
    return
  }
  func.func @transform_0(%arg0: i32) -> (i32, i32) {
    %c0_i32 = arith.constant 0 : i32
    %c0_i32_0 = arith.constant 0 : i32
    return %arg0, %c0_i32 : i32, i32
  }
  func.func @transform_1(%arg0: i32) -> (i32, i32) {
    %c0_i32 = arith.constant 0 : i32
    %c0_i32_0 = arith.constant 0 : i32
    %c0_i32_1 = arith.constant 0 : i32
    return %c0_i32, %c0_i32_0 : i32, i32
  }
  func.func @transform_2(%arg0: i32) -> (i32, i32) {
    %c0_i32 = arith.constant 0 : i32
    %c0_i32_0 = arith.constant 0 : i32
    %c0_i32_1 = arith.constant 0 : i32
    return %c0_i32, %c0_i32_0 : i32, i32
  }
  func.func @transform_3(%arg0: i32) -> (i32, i32) {
    %c0_i32 = arith.constant 0 : i32
    %c0_i32_0 = arith.constant 0 : i32
    return %arg0, %c0_i32 : i32, i32
  }
}

module attributes {stable_mosaic.version = 11 : i64} {
  func.func @_generator_kernel_single(%arg0: i32, %arg1: memref<16x32xbf16, #tpu.memory_space<vmem>>, %arg2: memref<128x32xbf16, #tpu.memory_space<vmem>>, %arg3: memref<1x128xf32, #tpu.memory_space<vmem>>, %arg4: memref<16x128xf32, #tpu.memory_space<vmem>>) attributes {dimension_semantics = [#tpu.dimension_semantics<parallel>], iteration_bounds = array<i64: 1>, scalar_prefetch = 0 : i64, scratch_operands = 0 : i64, tpu.core_type = #tpu.core_type<tc>, window_params = [{transform_indices = @transform_0, window_bounds = array<i64: 16, 32>}, {pipeline_mode = #tpu.pipeline_mode<synchronous>, transform_indices = @transform_1, window_bounds = array<i64: 128, 32>}, {pipeline_mode = #tpu.pipeline_mode<synchronous>, transform_indices = @transform_2, window_bounds = array<i64: 1, 128>}, {transform_indices = @transform_3, window_bounds = array<i64: 16, 128>}]} {
    %c0 = arith.constant 0 : index
    %c0_0 = arith.constant 0 : index
    %0 = vector.load %arg1[%c0, %c0_0] : memref<16x32xbf16, #tpu.memory_space<vmem>>, vector<16x32xbf16>
    %c0_1 = arith.constant 0 : index
    %c0_2 = arith.constant 0 : index
    %1 = vector.load %arg2[%c0_1, %c0_2] : memref<128x32xbf16, #tpu.memory_space<vmem>>, vector<128x32xbf16>
    %cst = arith.constant dense<0.000000e+00> : vector<16x128xf32>
    %2 = tpu.matmul %0, %1, %cst {dimension_numbers = #tpu.dot_dimension_numbers<[1], [1], [0], [0], [0, 0, 1, 0], [], []>} : vector<16x32xbf16>, vector<128x32xbf16>, vector<16x128xf32> -> vector<16x128xf32>
    %c0_3 = arith.constant 0 : index
    %c0_4 = arith.constant 0 : index
    %3 = vector.load %arg3[%c0_3, %c0_4] : memref<1x128xf32, #tpu.memory_space<vmem>>, vector<1x128xf32>
    %4 = vector.broadcast %3 : vector<1x128xf32> to vector<16x128xf32>
    %5 = arith.addf %2, %4 : vector<16x128xf32>
    %cst_5 = arith.constant dense<0xFF800000> : vector<16xf32>
    %6 = vector.multi_reduction <maximumf>, %5, %cst_5 [1] : vector<16x128xf32> to vector<16xf32>
    %7 = vector.shape_cast %6 : vector<16xf32> to vector<16x1xf32>
    %8 = vector.broadcast %7 : vector<16x1xf32> to vector<16x128xf32>
    %9 = arith.subf %5, %8 : vector<16x128xf32>
    %10 = math.exp %9 : vector<16x128xf32>
    %cst_6 = arith.constant dense<0.000000e+00> : vector<16xf32>
    %11 = vector.multi_reduction <add>, %10, %cst_6 [1] : vector<16x128xf32> to vector<16xf32>
    %12 = vector.shape_cast %11 : vector<16xf32> to vector<16x1xf32>
    %13 = math.log %12 : vector<16x1xf32>
    %14 = vector.broadcast %13 : vector<16x1xf32> to vector<16x128xf32>
    %15 = arith.subf %9, %14 : vector<16x128xf32>
    %c0_7 = arith.constant 0 : index
    %c0_8 = arith.constant 0 : index
    %16 = vector.load %arg4[%c0_7, %c0_8] : memref<16x128xf32, #tpu.memory_space<vmem>>, vector<16x128xf32>
    tpu.vector_store %arg4[%c0_7, %c0_8], %15 {strides = array<i32>} : memref<16x128xf32, #tpu.memory_space<vmem>>, vector<16x128xf32>,
    return
  }
  func.func @transform_0(%arg0: i32) -> (i32, i32) {
    %c0_i32 = arith.constant 0 : i32
    %c0_i32_0 = arith.constant 0 : i32
    return %arg0, %c0_i32 : i32, i32
  }
  func.func @transform_1(%arg0: i32) -> (i32, i32) {
    %c0_i32 = arith.constant 0 : i32
    %c0_i32_0 = arith.constant 0 : i32
    %c0_i32_1 = arith.constant 0 : i32
    return %c0_i32, %c0_i32_0 : i32, i32
  }
  func.func @transform_2(%arg0: i32) -> (i32, i32) {
    %c0_i32 = arith.constant 0 : i32
    %c0_i32_0 = arith.constant 0 : i32
    %c0_i32_1 = arith.constant 0 : i32
    return %c0_i32, %c0_i32_0 : i32, i32
  }
  func.func @transform_3(%arg0: i32) -> (i32, i32) {
    %c0_i32 = arith.constant 0 : i32
    %c0_i32_0 = arith.constant 0 : i32
    return %arg0, %c0_i32 : i32, i32
  }
}

</mosaic_0001>

<llo_original>
// kernel: tpu_custom_call.1
$region0: #{tpu_custom_call.1}
  #allocation0 [shape = 'u32[]', space=smem, size = 0x4, offset = 0x4, fixed_abs, tag = 'smem constant byte address 0x4 - core index']
  #allocation1 [shape = 'u32[144,128]{1,0:T(1,128)}', space=vmem, size = 0x12000, scoped, tag = 'internal scratch']
  %s0 = inlined_call_operand.vmem [shape: bf16[16,32], index: 0, kind: input, shape index: {}]
  %s1 = inlined_call_operand.vmem [shape: bf16[128,32], index: 1, kind: input, shape index: {}]
  %s2 = inlined_call_operand.vmem [shape: f32[1,128], index: 2, kind: input, shape index: {}]
  %s3 = inlined_call_operand.hbm [shape: f32[16,128], index: 3, kind: output, shape index: {}]
  %s4 = sld [smem:[#allocation0]]
  $region22: #{tpu_custom_call.1} parent=0
    _
  %s6 = ssub.s32 1, %s4
  %s7 = scalar_select 0, %s6, %s4
  $region1: #{tpu_custom_call.1} parent=0
    #allocation2 [shape = 'u8[8192]{0}', space=vmem, size = 0x2000, scoped, tag = 'output window, operand 0, single buffered']
    #allocation3 [shape = 's32[1]{0}', space=sflag, size = 0x4, scoped, tag = 'scoped memory for tpu_custom_call.1']
    %8 = vsyncpa [#allocation3], 0
    // Predicated region
    $region2: #{tpu_custom_call.1} parent=1 // pred_check
      _
    $region3: #{tpu_custom_call.1} parent=1 // pred_check_branch
      %10 = sbr.rel (0) target = $region5
    $region4: #{tpu_custom_call.1} parent=1 // pred_region
      _
    $region5: #{tpu_custom_call.1} parent=1 // pred_fallthru
      _
    // Predicated region
    $region6: #{tpu_custom_call.1} parent=1 // pred_check
      _
    $region7: #{tpu_custom_call.1} parent=1 // pred_check_branch
      %12 = sbr.rel (0) target = $region9
    $region8: #{tpu_custom_call.1} parent=1 // pred_region
      _
    $region9: #{tpu_custom_call.1} parent=1 // pred_fallthru
      _
    // Predicated region
    $region10: #{tpu_custom_call.1} parent=1 // pred_check
      _
    $region11: #{tpu_custom_call.1} parent=1 // pred_check_branch
      %14 = sbr.rel (0) target = $region13
    $region12: #{tpu_custom_call.1} parent=1 // pred_region
      _
    $region13: #{tpu_custom_call.1} parent=1 // pred_fallthru
      _
    %v16 = vld [vmem:[%s0] sm:$0xf]
    %v17 = vld [vmem:[%s0 + $0x4] sm:$0xf]
    %v18 = vld [vmem:[%s1] sm:$0xf]
    %v19 = vld [vmem:[%s1 + $0x4] sm:$0xf]
    %v20 = vld [vmem:[%s1 + $0x8] sm:$0xf]
    %v21 = vld [vmem:[%s1 + $0xc] sm:$0xf]
    %v22 = vld [vmem:[%s1 + $0x10] sm:$0xf]
    %v23 = vld [vmem:[%s1 + $0x14] sm:$0xf]
    %v24 = vld [vmem:[%s1 + $0x18] sm:$0xf]
    %v25 = vld [vmem:[%s1 + $0x1c] sm:$0xf]
    %v26 = vld [vmem:[%s1 + $0x20] sm:$0xf]
    %v27 = vld [vmem:[%s1 + $0x24] sm:$0xf]
    %v28 = vld [vmem:[%s1 + $0x28] sm:$0xf]
    %v29 = vld [vmem:[%s1 + $0x2c] sm:$0xf]
    %v30 = vld [vmem:[%s1 + $0x30] sm:$0xf]
    %v31 = vld [vmem:[%s1 + $0x34] sm:$0xf]
    %v32 = vld [vmem:[%s1 + $0x38] sm:$0xf]
    %v33 = vld [vmem:[%s1 + $0x3c] sm:$0xf]
    %v34 = vld [vmem:[%s2] sm:$0x1]
    %v36 = vlaneseq
    %v37 = vshrl.u32 %v36, 7
    %v38 = vsub.s32 0, %v37
    %v39 = vrot.slane %v34, %v38
    %v43 = vunpack.c.l.b16 %v16
    %v44 = vunpack.c.l.b16 %v17
    %v45 = vpack.c.b16 %v44, %v43
    %v62 = vunpack.c.l.b16 %v18
    %v63 = vunpack.c.l.b16 %v19
    %v64 = vunpack.c.l.b16 %v20
    %v65 = vunpack.c.l.b16 %v21
    %v66 = vunpack.c.l.b16 %v22
    %v67 = vunpack.c.l.b16 %v23
    %v68 = vunpack.c.l.b16 %v24
    %v69 = vunpack.c.l.b16 %v25
    %v70 = vunpack.c.l.b16 %v26
    %v71 = vunpack.c.l.b16 %v27
    %v72 = vunpack.c.l.b16 %v28
    %v73 = vunpack.c.l.b16 %v29
    %v74 = vunpack.c.l.b16 %v30
    %v75 = vunpack.c.l.b16 %v31
    %v76 = vunpack.c.l.b16 %v32
    %v77 = vunpack.c.l.b16 %v33
    %v78 = vpack.c.b16 %v63, %v62
    %v79 = vpack.c.b16 %v65, %v64
    %v80 = vpack.c.b16 %v67, %v66
    %v81 = vpack.c.b16 %v69, %v68
    %v82 = vpack.c.b16 %v71, %v70
    %v83 = vpack.c.b16 %v73, %v72
    %v84 = vpack.c.b16 %v75, %v74
    %v85 = vpack.c.b16 %v77, %v76
    %vm86 = vcmask 261120
    %v88 = vsel %vm86, %v45, 0
    %v91 = vsel %vm86, %v78, 0
    %v94 = vsel %vm86, %v79, 0
    %v97 = vsel %vm86, %v80, 0
    %v100 = vsel %vm86, %v81, 0
    %v103 = vsel %vm86, %v82, 0
    %v106 = vsel %vm86, %v83, 0
    %v109 = vsel %vm86, %v84, 0
    %v112 = vsel %vm86, %v85, 0
    %114 = vmatprep.subr.bf16.mxu0 0
    %115 = vmatpush1.bf16.xpose.msra.mxu0 %v91
    %116 = vmatprep.subr.bf16.mxu0 0
    %117 = vmatpush1.bf16.xpose.msra.mxu0 %v94
    %118 = vmatprep.subr.bf16.mxu0 0
    %119 = vmatpush1.bf16.xpose.msra.mxu0 %v97
    %120 = vmatprep.subr.bf16.mxu0 0
    %121 = vmatpush1.bf16.xpose.msra.mxu0 %v100
    %122 = vmatprep.subr.bf16.mxu0 0
    %123 = vmatpush1.bf16.xpose.msra.mxu0 %v103
    %124 = vmatprep.subr.bf16.mxu0 0
    %125 = vmatpush1.bf16.xpose.msra.mxu0 %v106
    %126 = vmatprep.subr.bf16.mxu0 0
    %127 = vmatpush1.bf16.xpose.msra.mxu0 %v109
    %128 = vmatprep.subr.bf16.mxu0 0
    %129 = vmatpush1.bf16.xpose.msra.mxu0 %v112
    %130 = vmatprep.subr.bf16.mxu0 0
    %131 = vmatpush1.bf16.xpose.msra.mxu0 0
    %132 = vmatprep.subr.bf16.mxu0 0
    %133 = vmatpush1.bf16.xpose.msra.mxu0 0
    %134 = vmatprep.subr.bf16.mxu0 0
    %135 = vmatpush1.bf16.xpose.msra.mxu0 0
    %136 = vmatprep.subr.bf16.mxu0 0
    %137 = vmatpush1.bf16.xpose.msra.mxu0 0
    %138 = vmatprep.subr.bf16.mxu0 0
    %139 = vmatpush1.bf16.xpose.msra.mxu0 0
    %140 = vmatprep.subr.bf16.mxu0 0
    %141 = vmatpush1.bf16.xpose.msra.mxu0 0
    %142 = vmatprep.subr.bf16.mxu0 0
    %143 = vmatpush1.bf16.xpose.msra.mxu0 0
    %144 = vmatprep.subr.bf16.mxu0 0
    %145 = vmatpush1.bf16.xpose.msra.mxu0 0
    %146 = vmatprep.mubr.bf16.mxu0 0
    %147 = vmatmul.mubr.bf16.gmra.mrb[0].mxu0 %v88
    %v148 = vpop.f32.mrb[0].mxu0
    %v149 = vadd.f32 %v39, %v148
    %v150 = vpop.f32.mrb[0].mxu0
    %v151 = vpop.f32.mrb[0].mxu0
    %v152 = vadd.f32 %v39, %v151
    %v153 = vpop.f32.mrb[0].mxu0
    %154 = vdwg.mxu0
    %155 = vmax.xlane.f32.xlu0 %v149
    %v156 = vpop.xlane.xlu0 %155
    %157 = vmax.xlane.f32.xlu0 %v152
    %v158 = vpop.xlane.xlu0 %157
    %v159 = vsub.f32 %v149, %v156
    %v160 = vsub.f32 %v152, %v158
    %v161 = vmul.f32 %v159, 1.442695
    %v162 = vpow.pop %v161
    %v163 = vmul.f32 %v160, 1.442695
    %v164 = vpow.pop %v163
    %165 = vadd.xlane.f32.xlu0 %v162
    %v166 = vpop.xlane.xlu0 %165
    %167 = vadd.xlane.f32.xlu0 %v164
    %v168 = vpop.xlane.xlu0 %167
    %v169 = vlog2.pop %v166
    %v170 = vmul.f32 %v169, 0.6931472
    %v171 = vlog2.pop %v168
    %v172 = vmul.f32 %v171, 0.6931472
    %v173 = vsub.f32 %v159, %v170
    %v174 = vsub.f32 %v160, %v172
    %175 = vst [vmem:[#allocation2] sm:$0xff] %v173
    %176 = vst [vmem:[#allocation2 + $0x8] sm:$0xff] %v174
    // Predicated region
    $region14: #{tpu_custom_call.1} parent=1 // pred_check
      _
    $region15: #{tpu_custom_call.1} parent=1 // pred_check_branch
      %178 = sbr.rel (0) target = $region17
    $region16: #{tpu_custom_call.1} parent=1 // pred_region
      %s180 = ssub.s32 256, 256
      %181 = vsyncadd [#allocation3], %s180
      %s182 = sshll.u32 [#allocation2], 4
      %s183 = int_to_ptr.vmem [resolvable:$true] %s182
      %188 = dma.vmem_to_hbm [thread:$0]  %s183, 256, %s3, [#allocation3], 128, 128, 8
    $region17: #{tpu_custom_call.1} parent=1 // pred_fallthru
      _
    // Predicated region
    $region18: #{tpu_custom_call.1} parent=1 // pred_check
      _
    $region19: #{tpu_custom_call.1} parent=1 // pred_check_branch
      %190 = sbr.rel (0) target = $region21
    $region20: #{tpu_custom_call.1} parent=1 // pred_region
      %191 = dma.done [#allocation3], 256
    $region21: #{tpu_custom_call.1} parent=1 // pred_fallthru
      _
    %192 = vsyncpa [#allocation3], 1

// kernel: tpu_custom_call.1
$region0: #{tpu_custom_call.1}
  #allocation0 [shape = 'u32[]', space=smem, size = 0x4, offset = 0x4, fixed_abs, tag = 'smem constant byte address 0x4 - core index']
  #allocation1 [shape = 'u32[144,128]{1,0:T(1,128)}', space=vmem, size = 0x12000, scoped, tag = 'internal scratch']
  %s0 = inlined_call_operand.vmem [shape: bf16[16,32], index: 0, kind: input, shape index: {}]
  %s1 = inlined_call_operand.vmem [shape: bf16[128,32], index: 1, kind: input, shape index: {}]
  %s2 = inlined_call_operand.vmem [shape: f32[1,128], index: 2, kind: input, shape index: {}]
  %s3 = inlined_call_operand.hbm [shape: f32[16,128], index: 3, kind: output, shape index: {}]
  %s4 = sld [smem:[#allocation0]]
  $region22: #{tpu_custom_call.1} parent=0
    _
  %s6 = ssub.s32 1, %s4
  %s7 = scalar_select 0, %s6, %s4
  $region1: #{tpu_custom_call.1} parent=0
    #allocation2 [shape = 'u8[8192]{0}', space=vmem, size = 0x2000, scoped, tag = 'output window, operand 0, single buffered']
    #allocation3 [shape = 's32[1]{0}', space=sflag, size = 0x4, scoped, tag = 'scoped memory for tpu_custom_call.1']
    %8 = vsyncpa [#allocation3], 0
    // Predicated region
    $region2: #{tpu_custom_call.1} parent=1 // pred_check
      _
    $region3: #{tpu_custom_call.1} parent=1 // pred_check_branch
      %10 = sbr.rel (0) target = $region5
    $region4: #{tpu_custom_call.1} parent=1 // pred_region
      _
    $region5: #{tpu_custom_call.1} parent=1 // pred_fallthru
      _
    // Predicated region
    $region6: #{tpu_custom_call.1} parent=1 // pred_check
      _
    $region7: #{tpu_custom_call.1} parent=1 // pred_check_branch
      %12 = sbr.rel (0) target = $region9
    $region8: #{tpu_custom_call.1} parent=1 // pred_region
      _
    $region9: #{tpu_custom_call.1} parent=1 // pred_fallthru
      _
    // Predicated region
    $region10: #{tpu_custom_call.1} parent=1 // pred_check
      _
    $region11: #{tpu_custom_call.1} parent=1 // pred_check_branch
      %14 = sbr.rel (0) target = $region13
    $region12: #{tpu_custom_call.1} parent=1 // pred_region
      _
    $region13: #{tpu_custom_call.1} parent=1 // pred_fallthru
      _
    %v16 = vld [vmem:[%s0] sm:$0xf]
    %v17 = vld [vmem:[%s0 + $0x4] sm:$0xf]
    %v18 = vld [vmem:[%s1] sm:$0xf]
    %v19 = vld [vmem:[%s1 + $0x4] sm:$0xf]
    %v20 = vld [vmem:[%s1 + $0x8] sm:$0xf]
    %v21 = vld [vmem:[%s1 + $0xc] sm:$0xf]
    %v22 = vld [vmem:[%s1 + $0x10] sm:$0xf]
    %v23 = vld [vmem:[%s1 + $0x14] sm:$0xf]
    %v24 = vld [vmem:[%s1 + $0x18] sm:$0xf]
    %v25 = vld [vmem:[%s1 + $0x1c] sm:$0xf]
    %v26 = vld [vmem:[%s1 + $0x20] sm:$0xf]
    %v27 = vld [vmem:[%s1 + $0x24] sm:$0xf]
    %v28 = vld [vmem:[%s1 + $0x28] sm:$0xf]
    %v29 = vld [vmem:[%s1 + $0x2c] sm:$0xf]
    %v30 = vld [vmem:[%s1 + $0x30] sm:$0xf]
    %v31 = vld [vmem:[%s1 + $0x34] sm:$0xf]
    %v32 = vld [vmem:[%s1 + $0x38] sm:$0xf]
    %v33 = vld [vmem:[%s1 + $0x3c] sm:$0xf]
    %v34 = vld [vmem:[%s2] sm:$0x1]
    %v36 = vlaneseq
    %v37 = vshrl.u32 %v36, 7
    %v38 = vsub.s32 0, %v37
    %v39 = vrot.slane %v34, %v38
    %v43 = vunpack.c.l.b16 %v16
    %v44 = vunpack.c.l.b16 %v17
    %v45 = vpack.c.b16 %v44, %v43
    %v62 = vunpack.c.l.b16 %v18
    %v63 = vunpack.c.l.b16 %v19
    %v64 = vunpack.c.l.b16 %v20
    %v65 = vunpack.c.l.b16 %v21
    %v66 = vunpack.c.l.b16 %v22
    %v67 = vunpack.c.l.b16 %v23
    %v68 = vunpack.c.l.b16 %v24
    %v69 = vunpack.c.l.b16 %v25
    %v70 = vunpack.c.l.b16 %v26
    %v71 = vunpack.c.l.b16 %v27
    %v72 = vunpack.c.l.b16 %v28
    %v73 = vunpack.c.l.b16 %v29
    %v74 = vunpack.c.l.b16 %v30
    %v75 = vunpack.c.l.b16 %v31
    %v76 = vunpack.c.l.b16 %v32
    %v77 = vunpack.c.l.b16 %v33
    %v78 = vpack.c.b16 %v63, %v62
    %v79 = vpack.c.b16 %v65, %v64
    %v80 = vpack.c.b16 %v67, %v66
    %v81 = vpack.c.b16 %v69, %v68
    %v82 = vpack.c.b16 %v71, %v70
    %v83 = vpack.c.b16 %v73, %v72
    %v84 = vpack.c.b16 %v75, %v74
    %v85 = vpack.c.b16 %v77, %v76
    %vm86 = vcmask 261120
    %v88 = vsel %vm86, %v45, 0
    %v91 = vsel %vm86, %v78, 0
    %v94 = vsel %vm86, %v79, 0
    %v97 = vsel %vm86, %v80, 0
    %v100 = vsel %vm86, %v81, 0
    %v103 = vsel %vm86, %v82, 0
    %v106 = vsel %vm86, %v83, 0
    %v109 = vsel %vm86, %v84, 0
    %v112 = vsel %vm86, %v85, 0
    %114 = vmatprep.subr.bf16.mxu0 0
    %115 = vmatpush1.bf16.xpose.msra.mxu0 %v91
    %116 = vmatprep.subr.bf16.mxu0 0
    %117 = vmatpush1.bf16.xpose.msra.mxu0 %v94
    %118 = vmatprep.subr.bf16.mxu0 0
    %119 = vmatpush1.bf16.xpose.msra.mxu0 %v97
    %120 = vmatprep.subr.bf16.mxu0 0
    %121 = vmatpush1.bf16.xpose.msra.mxu0 %v100
    %122 = vmatprep.subr.bf16.mxu0 0
    %123 = vmatpush1.bf16.xpose.msra.mxu0 %v103
    %124 = vmatprep.subr.bf16.mxu0 0
    %125 = vmatpush1.bf16.xpose.msra.mxu0 %v106
    %126 = vmatprep.subr.bf16.mxu0 0
    %127 = vmatpush1.bf16.xpose.msra.mxu0 %v109
    %128 = vmatprep.subr.bf16.mxu0 0
    %129 = vmatpush1.bf16.xpose.msra.mxu0 %v112
    %130 = vmatprep.subr.bf16.mxu0 0
    %131 = vmatpush1.bf16.xpose.msra.mxu0 0
    %132 = vmatprep.subr.bf16.mxu0 0
    %133 = vmatpush1.bf16.xpose.msra.mxu0 0
    %134 = vmatprep.subr.bf16.mxu0 0
    %135 = vmatpush1.bf16.xpose.msra.mxu0 0
    %136 = vmatprep.subr.bf16.mxu0 0
    %137 = vmatpush1.bf16.xpose.msra.mxu0 0
    %138 = vmatprep.subr.bf16.mxu0 0
    %139 = vmatpush1.bf16.xpose.msra.mxu0 0
    %140 = vmatprep.subr.bf16.mxu0 0
    %141 = vmatpush1.bf16.xpose.msra.mxu0 0
    %142 = vmatprep.subr.bf16.mxu0 0
    %143 = vmatpush1.bf16.xpose.msra.mxu0 0
    %144 = vmatprep.subr.bf16.mxu0 0
    %145 = vmatpush1.bf16.xpose.msra.mxu0 0
    %146 = vmatprep.mubr.bf16.mxu0 0
    %147 = vmatmul.mubr.bf16.gmra.mrb[0].mxu0 %v88
    %v148 = vpop.f32.mrb[0].mxu0
    %v149 = vadd.f32 %v39, %v148
    %v150 = vpop.f32.mrb[0].mxu0
    %v151 = vpop.f32.mrb[0].mxu0
    %v152 = vadd.f32 %v39, %v151
    %v153 = vpop.f32.mrb[0].mxu0
    %154 = vdwg.mxu0
    %155 = vmax.xlane.f32.xlu0 %v149
    %v156 = vpop.xlane.xlu0 %155
    %157 = vmax.xlane.f32.xlu0 %v152
    %v158 = vpop.xlane.xlu0 %157
    %v159 = vsub.f32 %v149, %v156
    %v160 = vsub.f32 %v152, %v158
    %v161 = vmul.f32 %v159, 1.442695
    %v162 = vpow.pop %v161
    %v163 = vmul.f32 %v160, 1.442695
    %v164 = vpow.pop %v163
    %165 = vadd.xlane.f32.xlu0 %v162
    %v166 = vpop.xlane.xlu0 %165
    %167 = vadd.xlane.f32.xlu0 %v164
    %v168 = vpop.xlane.xlu0 %167
    %v169 = vlog2.pop %v166
    %v170 = vmul.f32 %v169, 0.6931472
    %v171 = vlog2.pop %v168
    %v172 = vmul.f32 %v171, 0.6931472
    %v173 = vsub.f32 %v159, %v170
    %v174 = vsub.f32 %v160, %v172
    %175 = vst [vmem:[#allocation2] sm:$0xff] %v173
    %176 = vst [vmem:[#allocation2 + $0x8] sm:$0xff] %v174
    // Predicated region
    $region14: #{tpu_custom_call.1} parent=1 // pred_check
      _
    $region15: #{tpu_custom_call.1} parent=1 // pred_check_branch
      %178 = sbr.rel (0) target = $region17
    $region16: #{tpu_custom_call.1} parent=1 // pred_region
      %s180 = ssub.s32 256, 256
      %181 = vsyncadd [#allocation3], %s180
      %s182 = sshll.u32 [#allocation2], 4
      %s183 = int_to_ptr.vmem [resolvable:$true] %s182
      %188 = dma.vmem_to_hbm [thread:$0]  %s183, 256, %s3, [#allocation3], 128, 128, 8
    $region17: #{tpu_custom_call.1} parent=1 // pred_fallthru
      _
    // Predicated region
    $region18: #{tpu_custom_call.1} parent=1 // pred_check
      _
    $region19: #{tpu_custom_call.1} parent=1 // pred_check_branch
      %190 = sbr.rel (0) target = $region21
    $region20: #{tpu_custom_call.1} parent=1 // pred_region
      %191 = dma.done [#allocation3], 256
    $region21: #{tpu_custom_call.1} parent=1 // pred_fallthru
      _
    %192 = vsyncpa [#allocation3], 1

</llo_original>
